<compile_context>
chip_gen: v7x
topology: tpu7x:2x2x1
jax: 0.10.0
libtpu: 0.0.40
codegen_flags: <defaults>
</compile_context>

<pallas_src>
import jax
import jax.numpy as jnp
from jax.experimental import pallas as pl
from jax.experimental.pallas import tpu as pltpu

LATENT_SIZE = 64
HIDDEN_SIZE = 256
IMAGE_SIZE = 28 * 28          # 784
IMAGE_PAD = 7 * 128           # 896, lane-dense (784 % 128 != 0)


def _round_up(x, m):
    return ((x + m - 1) // m) * m


def generator_kernel(z_ref, w1_ref, b1_ref, w2_ref, b2_ref, w3_ref, b3_ref, out_ref):
    # Layer 1: Linear(latent -> hidden) + ReLU   (bf16 operands, f32 accumulate)
    h1 = jnp.dot(z_ref[...], w1_ref[...], preferred_element_type=jnp.float32)
    h1 = jnp.maximum(h1 + b1_ref[...], 0.0)

    # Layer 2: Linear(hidden -> hidden) + ReLU
    h2 = jnp.dot(h1.astype(jnp.bfloat16), w2_ref[...],
                 preferred_element_type=jnp.float32)
    h2 = jnp.maximum(h2 + b2_ref[...], 0.0)

    # Layer 3: Linear(hidden -> image_pad) + Tanh
    h3 = jnp.dot(h2.astype(jnp.bfloat16), w3_ref[...],
                 preferred_element_type=jnp.float32)
    out_ref[...] = jnp.tanh(h3 + b3_ref[...]).astype(out_ref.dtype)


def generator_forward(z, params, tile_b=256):
    """z: (B, LATENT_SIZE) float array. Returns (B, IMAGE_SIZE) float32."""
    w1, b1, w2, b2, w3p, b3p = params
    B = z.shape[0]

    # Batch tile: multiple of 8 (sublane), capped at tile_b for VMEM safety
    # (256-aligned M fills the v6e/v7x MXU; v5e is 128-aligned and 256 % 128 == 0).
    tb = min(tile_b, _round_up(B, 8))
    b_pad = _round_up(B, tb)

    z_bf16 = z.astype(jnp.bfloat16)
    if b_pad != B:
        z_bf16 = jnp.pad(z_bf16, ((0, b_pad - B), (0, 0)))

    grid = (b_pad // tb,)

    # z / out move with the batch grid axis; weights & biases are resident
    # (constant index_map -> fetched once, reused every grid step).
    resident = lambda shape: pl.BlockSpec(shape, lambda i: (0, 0))

    out = pl.pallas_call(
        generator_kernel,
        out_shape=jax.ShapeDtypeStruct((b_pad, IMAGE_PAD), jnp.float32),
        grid=grid,
        in_specs=[
            pl.BlockSpec((tb, LATENT_SIZE), lambda i: (i, 0)),   # z tile
            resident(w1.shape),                                  # (64, 256)  bf16
            resident(b1.shape),                                  # (1, 256)   f32
            resident(w2.shape),                                  # (256, 256) bf16
            resident(b2.shape),                                  # (1, 256)   f32
            resident(w3p.shape),                                 # (256, 896) bf16
            resident(b3p.shape),                                 # (1, 896)   f32
        ],
        out_specs=pl.BlockSpec((tb, IMAGE_PAD), lambda i: (i, 0)),
        compiler_params=pltpu.CompilerParams(
            dimension_semantics=("parallel",),   # megacore on v7x
        ),
    )(z_bf16, w1, b1, w2, b2, w3p, b3p)

    return out[:B, :IMAGE_SIZE]


def init_params(key):
    """Deterministic PyTorch-like fan-in uniform init.

    Weights are cast to bf16 once here (not per call); biases stay f32.
    w3/b3 are padded on the output dim 784 -> 896 with zeros (lane-dense stores).
    """
    keys = jax.random.split(key, 6)

    def linear_init(kw, kb, fan_in, fan_out):
        bound = 1.0 / jnp.sqrt(float(fan_in))
        w = jax.random.uniform(kw, (fan_in, fan_out), jnp.float32, -bound, bound)
        b = jax.random.uniform(kb, (1, fan_out), jnp.float32, -bound, bound)
        return w, b

    w1, b1 = linear_init(keys[0], keys[1], LATENT_SIZE, HIDDEN_SIZE)
    w2, b2 = linear_init(keys[2], keys[3], HIDDEN_SIZE, HIDDEN_SIZE)
    w3, b3 = linear_init(keys[4], keys[5], HIDDEN_SIZE, IMAGE_SIZE)

    # Pad layer 3 output dim to 896 (zeros in the padded columns -> sliced off later).
    w3p = jnp.pad(w3, ((0, 0), (0, IMAGE_PAD - IMAGE_SIZE)))
    b3p = jnp.pad(b3, ((0, 0), (0, IMAGE_PAD - IMAGE_SIZE)))

    return (w1.astype(jnp.bfloat16), b1,
            w2.astype(jnp.bfloat16), b2,
            w3p.astype(jnp.bfloat16), b3p)


def generator_reference(z, params):
    """Pure-JAX f32 reference on the same (bf16-rounded) weights."""
    w1, b1, w2, b2, w3p, b3p = params
    w1f = w1.astype(jnp.float32)
    w2f = w2.astype(jnp.float32)
    w3f = w3p.astype(jnp.float32)[:, :IMAGE_SIZE]
    b3f = b3p[:, :IMAGE_SIZE]
    h = jnp.maximum(z @ w1f + b1, 0.0)
    h = jnp.maximum(h @ w2f + b2, 0.0)
    return jnp.tanh(h @ w3f + b3f)


if __name__ == "__main__":
    key = jax.random.PRNGKey(0)
    k_params, k_z = jax.random.split(key)

    params = init_params(k_params)
    batch = 8
    z = jax.random.normal(k_z, (batch, LATENT_SIZE), dtype=jnp.float32)

    out = generator_forward(z, params)
    out = jax.block_until_ready(out)

    ref = generator_reference(z, params)
    assert out.shape == (batch, IMAGE_SIZE)
    # bf16 operands + bf16 intermediate casts -> relaxed tolerance vs f32 reference.
    assert jnp.allclose(out, ref, atol=2e-2, rtol=2e-2), (
        float(jnp.max(jnp.abs(out - ref))))

    print("KERNEL_OK")
</pallas_src>

<mosaic_0001>
module attributes {stable_mosaic.version = 11 : i64} {
  func.func @generator_kernel(%arg0: i32, %arg1: memref<8x64xbf16, #tpu.memory_space<vmem>>, %arg2: memref<64x256xbf16, #tpu.memory_space<vmem>>, %arg3: memref<1x256xf32, #tpu.memory_space<vmem>>, %arg4: memref<256x256xbf16, #tpu.memory_space<vmem>>, %arg5: memref<1x256xf32, #tpu.memory_space<vmem>>, %arg6: memref<256x896xbf16, #tpu.memory_space<vmem>>, %arg7: memref<1x896xf32, #tpu.memory_space<vmem>>, %arg8: memref<8x896xf32, #tpu.memory_space<vmem>>) attributes {dimension_semantics = [#tpu.dimension_semantics<parallel>], iteration_bounds = array<i64: 1>, scalar_prefetch = 0 : i64, scratch_operands = 0 : i64, tpu.core_type = #tpu.core_type<tc>, window_params = [{transform_indices = @transform_0, window_bounds = array<i64: 8, 64>}, {pipeline_mode = #tpu.pipeline_mode<synchronous>, transform_indices = @transform_1, window_bounds = array<i64: 64, 256>}, {pipeline_mode = #tpu.pipeline_mode<synchronous>, transform_indices = @transform_2, window_bounds = array<i64: 1, 256>}, {pipeline_mode = #tpu.pipeline_mode<synchronous>, transform_indices = @transform_3, window_bounds = array<i64: 256, 256>}, {pipeline_mode = #tpu.pipeline_mode<synchronous>, transform_indices = @transform_4, window_bounds = array<i64: 1, 256>}, {pipeline_mode = #tpu.pipeline_mode<synchronous>, transform_indices = @transform_5, window_bounds = array<i64: 256, 896>}, {pipeline_mode = #tpu.pipeline_mode<synchronous>, transform_indices = @transform_6, window_bounds = array<i64: 1, 896>}, {transform_indices = @transform_7, window_bounds = array<i64: 8, 896>}]} {
    %c0 = arith.constant 0 : index
    %c0_0 = arith.constant 0 : index
    %0 = vector.load %arg1[%c0, %c0_0] : memref<8x64xbf16, #tpu.memory_space<vmem>>, vector<8x64xbf16>
    %c0_1 = arith.constant 0 : index
    %c0_2 = arith.constant 0 : index
    %1 = vector.load %arg2[%c0_1, %c0_2] : memref<64x256xbf16, #tpu.memory_space<vmem>>, vector<64x256xbf16>
    %cst = arith.constant dense<0.000000e+00> : vector<8x256xf32>
    %2 = tpu.matmul %0, %1, %cst {dimension_numbers = #tpu.dot_dimension_numbers<[1], [0], [0], [1], [0, 0, 1, 1], [], []>} : vector<8x64xbf16>, vector<64x256xbf16>, vector<8x256xf32> -> vector<8x256xf32>
    %c0_3 = arith.constant 0 : index
    %c0_4 = arith.constant 0 : index
    %3 = vector.load %arg3[%c0_3, %c0_4] : memref<1x256xf32, #tpu.memory_space<vmem>>, vector<1x256xf32>
    %4 = vector.broadcast %3 : vector<1x256xf32> to vector<8x256xf32>
    %5 = arith.addf %2, %4 : vector<8x256xf32>
    %cst_5 = arith.constant 0.000000e+00 : f32
    %6 = vector.broadcast %cst_5 : f32 to vector<8x256xf32>
    %7 = arith.maximumf %5, %6 : vector<8x256xf32>
    %8 = arith.truncf %7 : vector<8x256xf32> to vector<8x256xbf16>
    %c0_6 = arith.constant 0 : index
    %c0_7 = arith.constant 0 : index
    %9 = vector.load %arg4[%c0_6, %c0_7] : memref<256x256xbf16, #tpu.memory_space<vmem>>, vector<256x256xbf16>
    %cst_8 = arith.constant dense<0.000000e+00> : vector<8x256xf32>
    %10 = tpu.matmul %8, %9, %cst_8 {dimension_numbers = #tpu.dot_dimension_numbers<[1], [0], [0], [1], [0, 0, 1, 1], [], []>} : vector<8x256xbf16>, vector<256x256xbf16>, vector<8x256xf32> -> vector<8x256xf32>
    %c0_9 = arith.constant 0 : index
    %c0_10 = arith.constant 0 : index
    %11 = vector.load %arg5[%c0_9, %c0_10] : memref<1x256xf32, #tpu.memory_space<vmem>>, vector<1x256xf32>
    %12 = vector.broadcast %11 : vector<1x256xf32> to vector<8x256xf32>
    %13 = arith.addf %10, %12 : vector<8x256xf32>
    %cst_11 = arith.constant 0.000000e+00 : f32
    %14 = vector.broadcast %cst_11 : f32 to vector<8x256xf32>
    %15 = arith.maximumf %13, %14 : vector<8x256xf32>
    %16 = arith.truncf %15 : vector<8x256xf32> to vector<8x256xbf16>
    %c0_12 = arith.constant 0 : index
    %c0_13 = arith.constant 0 : index
    %17 = vector.load %arg6[%c0_12, %c0_13] : memref<256x896xbf16, #tpu.memory_space<vmem>>, vector<256x896xbf16>
    %cst_14 = arith.constant dense<0.000000e+00> : vector<8x896xf32>
    %18 = tpu.matmul %16, %17, %cst_14 {dimension_numbers = #tpu.dot_dimension_numbers<[1], [0], [0], [1], [0, 0, 1, 1], [], []>} : vector<8x256xbf16>, vector<256x896xbf16>, vector<8x896xf32> -> vector<8x896xf32>
    %c0_15 = arith.constant 0 : index
    %c0_16 = arith.constant 0 : index
    %19 = vector.load %arg7[%c0_15, %c0_16] : memref<1x896xf32, #tpu.memory_space<vmem>>, vector<1x896xf32>
    %20 = vector.broadcast %19 : vector<1x896xf32> to vector<8x896xf32>
    %21 = arith.addf %18, %20 : vector<8x896xf32>
    %22 = math.tanh %21 : vector<8x896xf32>
    %c0_17 = arith.constant 0 : index
    %c0_18 = arith.constant 0 : index
    %23 = vector.load %arg8[%c0_17, %c0_18] : memref<8x896xf32, #tpu.memory_space<vmem>>, vector<8x896xf32>
    tpu.vector_store %arg8[%c0_17, %c0_18], %22 {strides = array<i32>} : memref<8x896xf32, #tpu.memory_space<vmem>>, vector<8x896xf32>,
    return
  }
  func.func @transform_0(%arg0: i32) -> (i32, i32) {
    %c0_i32 = arith.constant 0 : i32
    %c0_i32_0 = arith.constant 0 : i32
    return %arg0, %c0_i32 : i32, i32
  }
  func.func @transform_1(%arg0: i32) -> (i32, i32) {
    %c0_i32 = arith.constant 0 : i32
    %c0_i32_0 = arith.constant 0 : i32
    %c0_i32_1 = arith.constant 0 : i32
    return %c0_i32, %c0_i32_0 : i32, i32
  }
  func.func @transform_2(%arg0: i32) -> (i32, i32) {
    %c0_i32 = arith.constant 0 : i32
    %c0_i32_0 = arith.constant 0 : i32
    %c0_i32_1 = arith.constant 0 : i32
    return %c0_i32, %c0_i32_0 : i32, i32
  }
  func.func @transform_3(%arg0: i32) -> (i32, i32) {
    %c0_i32 = arith.constant 0 : i32
    %c0_i32_0 = arith.constant 0 : i32
    %c0_i32_1 = arith.constant 0 : i32
    return %c0_i32, %c0_i32_0 : i32, i32
  }
  func.func @transform_4(%arg0: i32) -> (i32, i32) {
    %c0_i32 = arith.constant 0 : i32
    %c0_i32_0 = arith.constant 0 : i32
    %c0_i32_1 = arith.constant 0 : i32
    return %c0_i32, %c0_i32_0 : i32, i32
  }
  func.func @transform_5(%arg0: i32) -> (i32, i32) {
    %c0_i32 = arith.constant 0 : i32
    %c0_i32_0 = arith.constant 0 : i32
    %c0_i32_1 = arith.constant 0 : i32
    return %c0_i32, %c0_i32_0 : i32, i32
  }
  func.func @transform_6(%arg0: i32) -> (i32, i32) {
    %c0_i32 = arith.constant 0 : i32
    %c0_i32_0 = arith.constant 0 : i32
    %c0_i32_1 = arith.constant 0 : i32
    return %c0_i32, %c0_i32_0 : i32, i32
  }
  func.func @transform_7(%arg0: i32) -> (i32, i32) {
    %c0_i32 = arith.constant 0 : i32
    %c0_i32_0 = arith.constant 0 : i32
    return %arg0, %c0_i32 : i32, i32
  }
}

</mosaic_0001>

<llo_original>
// kernel: tpu_custom_call.1
$region0: #{tpu_custom_call.1}
  #allocation0 [shape = 'u32[]', space=smem, size = 0x4, offset = 0x4, fixed_abs, tag = 'smem constant byte address 0x4 - core index']
  #allocation1 [shape = 'u32[144,128]{1,0:T(1,128)}', space=vmem, size = 0x12000, scoped, tag = 'internal scratch']
  %s0 = inlined_call_operand.hbm [shape: bf16[8,64], index: 0, kind: input, shape index: {}]
  %s1 = inlined_call_operand.hbm [shape: bf16[64,256], index: 1, kind: input, shape index: {}]
  %s2 = inlined_call_operand.vmem [shape: f32[1,256], index: 2, kind: input, shape index: {}]
  %s3 = inlined_call_operand.hbm [shape: bf16[256,256], index: 3, kind: input, shape index: {}]
  %s4 = inlined_call_operand.vmem [shape: f32[1,256], index: 4, kind: input, shape index: {}]
  %s5 = inlined_call_operand.hbm [shape: bf16[256,896], index: 5, kind: input, shape index: {}]
  %s6 = inlined_call_operand.vmem [shape: f32[1,896], index: 6, kind: input, shape index: {}]
  %s7 = inlined_call_operand.hbm [shape: f32[8,896], index: 7, kind: output, shape index: {}]
  %s8 = sld [smem:[#allocation0]]
  $region54: #{tpu_custom_call.1} parent=0
    _
  %s10 = ssub.s32 1, %s8
  %s11 = scalar_select 0, %s10, %s8
  $region1: #{tpu_custom_call.1} parent=0
    #allocation2 [shape = 'u8[2048]{0}', space=vmem, size = 0x800, scoped, tag = 'input window, operand 0, single buffered']
    #allocation3 [shape = 's32[1]{0}', space=sflag, size = 0x4, scoped, tag = 'scoped memory for tpu_custom_call.1']
    #allocation4 [shape = 's32[1]{0}', space=sflag, size = 0x4, scoped, tag = 'scoped memory for tpu_custom_call.1']
    #allocation5 [shape = 'u8[32768]{0}', space=vmem, size = 0x8000, scoped, tag = 'input window, operand 1, single buffered']
    #allocation6 [shape = 's32[1]{0}', space=sflag, size = 0x4, scoped, tag = 'scoped memory for tpu_custom_call.1']
    #allocation7 [shape = 'u8[131072]{0}', space=vmem, size = 0x20000, scoped, tag = 'input window, operand 3, single buffered']
    #allocation8 [shape = 'u8[458752]{0}', space=vmem, size = 0x70000, scoped, tag = 'input window, operand 5, single buffered']
    #allocation9 [shape = 's32[1]{0}', space=sflag, size = 0x4, scoped, tag = 'scoped memory for tpu_custom_call.1']
    #allocation10 [shape = 'u8[28672]{0}', space=vmem, size = 0x7000, scoped, tag = 'output window, operand 0, single buffered']
    %12 = vsyncpa [#allocation3], 0
    %13 = vsyncpa [#allocation6], 0
    %14 = vsyncpa [#allocation9], 0
    %15 = vsyncpa [#allocation4], 0
    // Predicated region
    $region2: #{tpu_custom_call.1} parent=1 // pred_check
      _
    $region3: #{tpu_custom_call.1} parent=1 // pred_check_branch
      %17 = sbr.rel (0) target = $region5
    $region4: #{tpu_custom_call.1} parent=1 // pred_region
      %s19 = ssub.s32 64, 64
      %20 = vsyncadd [#allocation3], %s19
      %s22 = sshll.u32 [#allocation2], 4
      %s23 = int_to_ptr.vmem [resolvable:$true] %s22
      %25 = dma.hbm_to_vmem [thread:$0]  %s0, 64, %s23, [#allocation3]
    $region5: #{tpu_custom_call.1} parent=1 // pred_fallthru
      _
    // Predicated region
    $region6: #{tpu_custom_call.1} parent=1 // pred_check
      _
    $region7: #{tpu_custom_call.1} parent=1 // pred_check_branch
      %27 = sbr.rel (0) target = $region9
    $region8: #{tpu_custom_call.1} parent=1 // pred_region
      %s29 = ssub.s32 1024, 1024
      %30 = vsyncadd [#allocation6], %s29
      %s31 = sshll.u32 [#allocation5], 4
      %s32 = int_to_ptr.vmem [resolvable:$true] %s31
      %37 = dma.hbm_to_vmem [thread:$0]  %s1, 1024, %s32, [#allocation6], 128, 128, 8
    $region9: #{tpu_custom_call.1} parent=1 // pred_fallthru
      _
    // Predicated region
    $region10: #{tpu_custom_call.1} parent=1 // pred_check
      _
    $region11: #{tpu_custom_call.1} parent=1 // pred_check_branch
      %39 = sbr.rel (0) target = $region13
    $region12: #{tpu_custom_call.1} parent=1 // pred_region
      _
    $region13: #{tpu_custom_call.1} parent=1 // pred_fallthru
      _
    // Predicated region
    $region14: #{tpu_custom_call.1} parent=1 // pred_check
      _
    $region15: #{tpu_custom_call.1} parent=1 // pred_check_branch
      %41 = sbr.rel (0) target = $region17
    $region16: #{tpu_custom_call.1} parent=1 // pred_region
      %s43 = ssub.s32 4096, 4096
      %44 = vsyncadd [#allocation6], %s43
      %s45 = sshll.u32 [#allocation7], 4
      %s46 = int_to_ptr.vmem [resolvable:$true] %s45
      %51 = dma.hbm_to_vmem [thread:$0]  %s3, 4096, %s46, [#allocation6], 128, 128, 8
    $region17: #{tpu_custom_call.1} parent=1 // pred_fallthru
      _
    // Predicated region
    $region18: #{tpu_custom_call.1} parent=1 // pred_check
      _
    $region19: #{tpu_custom_call.1} parent=1 // pred_check_branch
      %53 = sbr.rel (0) target = $region21
    $region20: #{tpu_custom_call.1} parent=1 // pred_region
      _
    $region21: #{tpu_custom_call.1} parent=1 // pred_fallthru
      _
    // Predicated region
    $region22: #{tpu_custom_call.1} parent=1 // pred_check
      _
    $region23: #{tpu_custom_call.1} parent=1 // pred_check_branch
      %55 = sbr.rel (0) target = $region25
    $region24: #{tpu_custom_call.1} parent=1 // pred_region
      %s57 = ssub.s32 14336, 14336
      %58 = vsyncadd [#allocation9], %s57
      %s59 = sshll.u32 [#allocation8], 4
      %s60 = int_to_ptr.vmem [resolvable:$true] %s59
      %65 = dma.hbm_to_vmem [thread:$0]  %s5, 14336, %s60, [#allocation9], 448, 448, 28
    $region25: #{tpu_custom_call.1} parent=1 // pred_fallthru
      _
    // Predicated region
    $region26: #{tpu_custom_call.1} parent=1 // pred_check
      _
    $region27: #{tpu_custom_call.1} parent=1 // pred_check_branch
      %67 = sbr.rel (0) target = $region29
    $region28: #{tpu_custom_call.1} parent=1 // pred_region
      _
    $region29: #{tpu_custom_call.1} parent=1 // pred_fallthru
      _
    // Predicated region
    $region30: #{tpu_custom_call.1} parent=1 // pred_check
      _
    $region31: #{tpu_custom_call.1} parent=1 // pred_check_branch
      %69 = sbr.rel (0) target = $region33
    $region32: #{tpu_custom_call.1} parent=1 // pred_region
      %70 = dma.done [#allocation3], 64
    $region33: #{tpu_custom_call.1} parent=1 // pred_fallthru
      _
    // Predicated region
    $region34: #{tpu_custom_call.1} parent=1 // pred_check
      _
    $region35: #{tpu_custom_call.1} parent=1 // pred_check_branch
      %72 = sbr.rel (0) target = $region37
    $region36: #{tpu_custom_call.1} parent=1 // pred_region
      %73 = dma.done [#allocation6], 1024
    $region37: #{tpu_custom_call.1} parent=1 // pred_fallthru
      _
    // Predicated region
    $region38: #{tpu_custom_call.1} parent=1 // pred_check
      _
    $region39: #{tpu_custom_call.1} parent=1 // pred_check_branch
      %75 = sbr.rel (0) target = $region41
    $region40: #{tpu_custom_call.1} parent=1 // pred_region
      %76 = dma.done [#allocation6], 4096
    $region41: #{tpu_custom_call.1} parent=1 // pred_fallthru
      _
    // Predicated region
    $region42: #{tpu_custom_call.1} parent=1 // pred_check
      _
    $region43: #{tpu_custom_call.1} parent=1 // pred_check_branch
      %78 = sbr.rel (0) target = $region45
    $region44: #{tpu_custom_call.1} parent=1 // pred_region
      %79 = dma.done [#allocation9], 14336
    $region45: #{tpu_custom_call.1} parent=1 // pred_fallthru
      _
    %v81 = vld [vmem:[#allocation2] sm:$0xf]
    %v82 = vld [vmem:[#allocation5] sm:$0xff]
    %v83 = vld [vmem:[#allocation5 + $0x8] sm:$0xff]
    %v84 = vld [vmem:[#allocation5 + $0x10] sm:$0xff]
    %v85 = vld [vmem:[#allocation5 + $0x18] sm:$0xff]
    %v86 = vld [vmem:[#allocation5 + $0x20] sm:$0xff]
    %v87 = vld [vmem:[#allocation5 + $0x28] sm:$0xff]
    %v88 = vld [vmem:[#allocation5 + $0x30] sm:$0xff]
    %v89 = vld [vmem:[#allocation5 + $0x38] sm:$0xff]
    %v90 = vld [vmem:[%s2] sm:$0x3]
    %v92 = vlaneseq
    %v93 = vshrl.u32 %v92, 7
    %v94 = vsub.s32 0, %v93
    %v95 = vrot.slane %v90, %v94
    %v96 = vlaneseq
    %v97 = vshrl.u32 %v96, 7
    %v98 = vsub.s32 1, %v97
    %v99 = vrot.slane %v90, %v98
    %v110 = vunpack.c.l.b16 %v82
    %v111 = vunpack.c.h.b16 %v82
    %v112 = vunpack.c.l.b16 %v83
    %v113 = vunpack.c.h.b16 %v83
    %v114 = vunpack.c.l.b16 %v84
    %v115 = vunpack.c.h.b16 %v84
    %v116 = vunpack.c.l.b16 %v85
    %v117 = vunpack.c.h.b16 %v85
    %v118 = vunpack.c.l.b16 %v86
    %v119 = vunpack.c.h.b16 %v86
    %v120 = vunpack.c.l.b16 %v87
    %v121 = vunpack.c.h.b16 %v87
    %v122 = vunpack.c.l.b16 %v88
    %v123 = vunpack.c.h.b16 %v88
    %v124 = vunpack.c.l.b16 %v89
    %v125 = vunpack.c.h.b16 %v89
    %v126 = vpack.c.b16 %v112, %v110
    %v127 = vpack.c.b16 %v113, %v111
    %v128 = vpack.c.b16 %v116, %v114
    %v129 = vpack.c.b16 %v117, %v115
    %v130 = vpack.c.b16 %v120, %v118
    %v131 = vpack.c.b16 %v121, %v119
    %v132 = vpack.c.b16 %v124, %v122
    %v133 = vpack.c.b16 %v125, %v123
    %vm142 = vcmask 523264
    %v144 = vsel %vm142, %v81, 0
    %146 = vmatprep.subr.bf16.mxu0 %v127
    %147 = vmatpush1.bf16.msra.mxu0 %v126
    %148 = vmatprep.subr.bf16.mxu0 %v129
    %149 = vmatpush1.bf16.msra.mxu0 %v128
    %150 = vmatprep.subr.bf16.mxu0 %v131
    %151 = vmatpush1.bf16.msra.mxu0 %v130
    %152 = vmatprep.subr.bf16.mxu0 %v133
    %153 = vmatpush1.bf16.msra.mxu0 %v132
    %154 = vmatprep.subr.bf16.mxu0 0
    %155 = vmatpush1.bf16.msra.mxu0 0
    %156 = vmatprep.subr.bf16.mxu0 0
    %157 = vmatpush1.bf16.msra.mxu0 0
    %158 = vmatprep.subr.bf16.mxu0 0
    %159 = vmatpush1.bf16.msra.mxu0 0
    %160 = vmatprep.subr.bf16.mxu0 0
    %161 = vmatpush1.bf16.msra.mxu0 0
    %162 = vmatprep.subr.bf16.mxu0 0
    %163 = vmatpush1.bf16.msra.mxu0 0
    %164 = vmatprep.subr.bf16.mxu0 0
    %165 = vmatpush1.bf16.msra.mxu0 0
    %166 = vmatprep.subr.bf16.mxu0 0
    %167 = vmatpush1.bf16.msra.mxu0 0
    %168 = vmatprep.subr.bf16.mxu0 0
    %169 = vmatpush1.bf16.msra.mxu0 0
    %170 = vmatprep.subr.bf16.mxu0 0
    %171 = vmatpush1.bf16.msra.mxu0 0
    %172 = vmatprep.subr.bf16.mxu0 0
    %173 = vmatpush1.bf16.msra.mxu0 0
    %174 = vmatprep.subr.bf16.mxu0 0
    %175 = vmatpush1.bf16.msra.mxu0 0
    %176 = vmatprep.subr.bf16.mxu0 0
    %177 = vmatpush1.bf16.msra.mxu0 0
    %178 = vmatprep.mubr.bf16.mxu0 0
    %179 = vmatmul.mubr.bf16.gmra.mrb[0].mxu0 %v144
    %v180 = vpop.f32.mrb[0].mxu0
    %v181 = vadd.f32 %v95, %v180
    %v182 = vpop.f32.mrb[0].mxu0
    %v183 = vadd.f32 %v99, %v182
    %v184 = vpop.f32.mrb[0].mxu0
    %v185 = vpop.f32.mrb[0].mxu0
    %186 = vdwg.mxu0
    %v187 = vmax.f32 %v181, 0.0
    %v188 = vmax.f32 %v183, 0.0
    %v189 = vpack.c.bf16 %v187, %v187
    %v190 = vpack.c.bf16 %v188, %v188
    %v191 = vld [vmem:[#allocation7] sm:$0xff]
    %v192 = vld [vmem:[#allocation7 + $0x8] sm:$0xff]
    %v193 = vld [vmem:[#allocation7 + $0x10] sm:$0xff]
    %v194 = vld [vmem:[#allocation7 + $0x18] sm:$0xff]
    %v195 = vld [vmem:[#allocation7 + $0x20] sm:$0xff]
    %v196 = vld [vmem:[#allocation7 + $0x28] sm:$0xff]
    %v197 = vld [vmem:[#allocation7 + $0x30] sm:$0xff]
    %v198 = vld [vmem:[#allocation7 + $0x38] sm:$0xff]
    %v199 = vld [vmem:[#allocation7 + $0x40] sm:$0xff]
    %v200 = vld [vmem:[#allocation7 + $0x48] sm:$0xff]
    %v201 = vld [vmem:[#allocation7 + $0x50] sm:$0xff]
    %v202 = vld [vmem:[#allocation7 + $0x58] sm:$0xff]
    %v203 = vld [vmem:[#allocation7 + $0x60] sm:$0xff]
    %v204 = vld [vmem:[#allocation7 + $0x68] sm:$0xff]
    %v205 = vld [vmem:[#allocation7 + $0x70] sm:$0xff]
    %v206 = vld [vmem:[#allocation7 + $0x78] sm:$0xff]
    %v207 = vld [vmem:[#allocation7 + $0x80] sm:$0xff]
    %v208 = vld [vmem:[#allocation7 + $0x88] sm:$0xff]
    %v209 = vld [vmem:[#allocation7 + $0x90] sm:$0xff]
    %v210 = vld [vmem:[#allocation7 + $0x98] sm:$0xff]
    %v211 = vld [vmem:[#allocation7 + $0xa0] sm:$0xff]
    %v212 = vld [vmem:[#allocation7 + $0xa8] sm:$0xff]
    %v213 = vld [vmem:[#allocation7 + $0xb0] sm:$0xff]
    %v214 = vld [vmem:[#allocation7 + $0xb8] sm:$0xff]
    %v215 = vld [vmem:[#allocation7 + $0xc0] sm:$0xff]
    %v216 = vld [vmem:[#allocation7 + $0xc8] sm:$0xff]
    %v217 = vld [vmem:[#allocation7 + $0xd0] sm:$0xff]
    %v218 = vld [vmem:[#allocation7 + $0xd8] sm:$0xff]
    %v219 = vld [vmem:[#allocation7 + $0xe0] sm:$0xff]
    %v220 = vld [vmem:[#allocation7 + $0xe8] sm:$0xff]
    %v221 = vld [vmem:[#allocation7 + $0xf0] sm:$0xff]
    %v222 = vld [vmem:[#allocation7 + $0xf8] sm:$0xff]
    %v223 = vld [vmem:[%s4] sm:$0x3]
    %v225 = vlaneseq
    %v226 = vshrl.u32 %v225, 7
    %v227 = vsub.s32 0, %v226
    %v228 = vrot.slane %v223, %v227
    %v229 = vlaneseq
    %v230 = vshrl.u32 %v229, 7
    %v231 = vsub.s32 1, %v230
    %v232 = vrot.slane %v223, %v231
    %v267 = vunpack.c.l.b16 %v191
    %v268 = vunpack.c.h.b16 %v191
    %v269 = vunpack.c.l.b16 %v192
    %v270 = vunpack.c.h.b16 %v192
    %v271 = vunpack.c.l.b16 %v193
    %v272 = vunpack.c.h.b16 %v193
    %v273 = vunpack.c.l.b16 %v194
    %v274 = vunpack.c.h.b16 %v194
    %v275 = vunpack.c.l.b16 %v195
    %v276 = vunpack.c.h.b16 %v195
    %v277 = vunpack.c.l.b16 %v196
    %v278 = vunpack.c.h.b16 %v196
    %v279 = vunpack.c.l.b16 %v197
    %v280 = vunpack.c.h.b16 %v197
    %v281 = vunpack.c.l.b16 %v198
    %v282 = vunpack.c.h.b16 %v198
    %v283 = vunpack.c.l.b16 %v199
    %v284 = vunpack.c.h.b16 %v199
    %v285 = vunpack.c.l.b16 %v200
    %v286 = vunpack.c.h.b16 %v200
    %v287 = vunpack.c.l.b16 %v201
    %v288 = vunpack.c.h.b16 %v201
    %v289 = vunpack.c.l.b16 %v202
    %v290 = vunpack.c.h.b16 %v202
    %v291 = vunpack.c.l.b16 %v203
    %v292 = vunpack.c.h.b16 %v203
    %v293 = vunpack.c.l.b16 %v204
    %v294 = vunpack.c.h.b16 %v204
    %v295 = vunpack.c.l.b16 %v205
    %v296 = vunpack.c.h.b16 %v205
    %v297 = vunpack.c.l.b16 %v206
    %v298 = vunpack.c.h.b16 %v206
    %v299 = vunpack.c.l.b16 %v207
    %v300 = vunpack.c.h.b16 %v207
    %v301 = vunpack.c.l.b16 %v208
    %v302 = vunpack.c.h.b16 %v208
    %v303 = vunpack.c.l.b16 %v209
    %v304 = vunpack.c.h.b16 %v209
    %v305 = vunpack.c.l.b16 %v210
    %v306 = vunpack.c.h.b16 %v210
    %v307 = vunpack.c.l.b16 %v211
    %v308 = vunpack.c.h.b16 %v211
    %v309 = vunpack.c.l.b16 %v212
    %v310 = vunpack.c.h.b16 %v212
    %v311 = vunpack.c.l.b16 %v213
    %v312 = vunpack.c.h.b16 %v213
    %v313 = vunpack.c.l.b16 %v214
    %v314 = vunpack.c.h.b16 %v214
    %v315 = vunpack.c.l.b16 %v215
    %v316 = vunpack.c.h.b16 %v215
    %v317 = vunpack.c.l.b16 %v216
    %v318 = vunpack.c.h.b16 %v216
    %v319 = vunpack.c.l.b16 %v217
    %v320 = vunpack.c.h.b16 %v217
    %v321 = vunpack.c.l.b16 %v218
    %v322 = vunpack.c.h.b16 %v218
    %v323 = vunpack.c.l.b16 %v219
    %v324 = vunpack.c.h.b16 %v219
    %v325 = vunpack.c.l.b16 %v220
    %v326 = vunpack.c.h.b16 %v220
    %v327 = vunpack.c.l.b16 %v221
    %v328 = vunpack.c.h.b16 %v221
    %v329 = vunpack.c.l.b16 %v222
    %v330 = vunpack.c.h.b16 %v222
    %v331 = vpack.c.b16 %v269, %v267
    %v332 = vpack.c.b16 %v270, %v268
    %v333 = vpack.c.b16 %v273, %v271
    %v334 = vpack.c.b16 %v274, %v272
    %v335 = vpack.c.b16 %v277, %v275
    %v336 = vpack.c.b16 %v278, %v276
    %v337 = vpack.c.b16 %v281, %v279
    %v338 = vpack.c.b16 %v282, %v280
    %v339 = vpack.c.b16 %v285, %v283
    %v340 = vpack.c.b16 %v286, %v284
    %v341 = vpack.c.b16 %v289, %v287
    %v342 = vpack.c.b16 %v290, %v288
    %v343 = vpack.c.b16 %v293, %v291
    %v344 = vpack.c.b16 %v294, %v292
    %v345 = vpack.c.b16 %v297, %v295
    %v346 = vpack.c.b16 %v298, %v296
    %v347 = vpack.c.b16 %v301, %v299
    %v348 = vpack.c.b16 %v302, %v300
    %v349 = vpack.c.b16 %v305, %v303
    %v350 = vpack.c.b16 %v306, %v304
    %v351 = vpack.c.b16 %v309, %v307
    %v352 = vpack.c.b16 %v310, %v308
    %v353 = vpack.c.b16 %v313, %v311
    %v354 = vpack.c.b16 %v314, %v312
    %v355 = vpack.c.b16 %v317, %v315
    %v356 = vpack.c.b16 %v318, %v316
    %v357 = vpack.c.b16 %v321, %v319
    %v358 = vpack.c.b16 %v322, %v320
    %v359 = vpack.c.b16 %v325, %v323
    %v360 = vpack.c.b16 %v326, %v324
    %v361 = vpack.c.b16 %v329, %v327
    %v362 = vpack.c.b16 %v330, %v328
    %395 = vmatprep.subr.bf16.mxu0 %v332
    %396 = vmatpush1.bf16.msra.mxu0 %v331
    %397 = vmatprep.subr.bf16.mxu0 %v334
    %398 = vmatpush1.bf16.msra.mxu0 %v333
    %399 = vmatprep.subr.bf16.mxu0 %v336
    %400 = vmatpush1.bf16.msra.mxu0 %v335
    %401 = vmatprep.subr.bf16.mxu0 %v338
    %402 = vmatpush1.bf16.msra.mxu0 %v337
    %403 = vmatprep.subr.bf16.mxu0 %v340
    %404 = vmatpush1.bf16.msra.mxu0 %v339
    %405 = vmatprep.subr.bf16.mxu0 %v342
    %406 = vmatpush1.bf16.msra.mxu0 %v341
    %407 = vmatprep.subr.bf16.mxu0 %v344
    %408 = vmatpush1.bf16.msra.mxu0 %v343
    %409 = vmatprep.subr.bf16.mxu0 %v346
    %410 = vmatpush1.bf16.msra.mxu0 %v345
    %411 = vmatprep.subr.bf16.mxu0 %v348
    %412 = vmatpush1.bf16.msra.mxu0 %v347
    %413 = vmatprep.subr.bf16.mxu0 %v350
    %414 = vmatpush1.bf16.msra.mxu0 %v349
    %415 = vmatprep.subr.bf16.mxu0 %v352
    %416 = vmatpush1.bf16.msra.mxu0 %v351
    %417 = vmatprep.subr.bf16.mxu0 %v354
    %418 = vmatpush1.bf16.msra.mxu0 %v353
    %419 = vmatprep.subr.bf16.mxu0 %v356
    %420 = vmatpush1.bf16.msra.mxu0 %v355
    %421 = vmatprep.subr.bf16.mxu0 %v358
    %422 = vmatpush1.bf16.msra.mxu0 %v357
    %423 = vmatprep.subr.bf16.mxu0 %v360
    %424 = vmatpush1.bf16.msra.mxu0 %v359
    %425 = vmatprep.subr.bf16.mxu0 %v362
    %426 = vmatpush1.bf16.msra.mxu0 %v361
    %427 = vmatprep.mubr.bf16.mxu0 %v190
    %428 = vmatmul.mubr.bf16.gmra.mrb[0].mxu0 %v189
    %v429 = vpop.f32.mrb[0].mxu0
    %v430 = vadd.f32 %v228, %v429
    %v431 = vpop.f32.mrb[0].mxu0
    %v432 = vadd.f32 %v232, %v431
    %v433 = vpop.f32.mrb[0].mxu0
    %v434 = vpop.f32.mrb[0].mxu0
    %435 = vdwg.mxu0
    %v436 = vmax.f32 %v430, 0.0
    %v437 = vmax.f32 %v432, 0.0
    %v438 = vpack.c.bf16 %v436, %v436
    %v439 = vpack.c.bf16 %v437, %v437
    %v440 = vld [vmem:[#allocation8] sm:$0xff]
    %v441 = vld [vmem:[#allocation8 + $0x8] sm:$0xff]
    %v442 = vld [vmem:[#allocation8 + $0x10] sm:$0xff]
    %v443 = vld [vmem:[#allocation8 + $0x18] sm:$0xf]
    %v444 = vld [vmem:[#allocation8 + $0x1c] sm:$0xff]
    %v445 = vld [vmem:[#allocation8 + $0x24] sm:$0xff]
    %v446 = vld [vmem:[#allocation8 + $0x2c] sm:$0xff]
    %v447 = vld [vmem:[#allocation8 + $0x34] sm:$0xf]
    %v448 = vld [vmem:[#allocation8 + $0x38] sm:$0xff]
    %v449 = vld [vmem:[#allocation8 + $0x40] sm:$0xff]
    %v450 = vld [vmem:[#allocation8 + $0x48] sm:$0xff]
    %v451 = vld [vmem:[#allocation8 + $0x50] sm:$0xf]
    %v452 = vld [vmem:[#allocation8 + $0x54] sm:$0xff]
    %v453 = vld [vmem:[#allocation8 + $0x5c] sm:$0xff]
    %v454 = vld [vmem:[#allocation8 + $0x64] sm:$0xff]
    %v455 = vld [vmem:[#allocation8 + $0x6c] sm:$0xf]
    %v456 = vld [vmem:[#allocation8 + $0x70] sm:$0xff]
    %v457 = vld [vmem:[#allocation8 + $0x78] sm:$0xff]
    %v458 = vld [vmem:[#allocation8 + $0x80] sm:$0xff]
    %v459 = vld [vmem:[#allocation8 + $0x88] sm:$0xf]
    %v460 = vld [vmem:[#allocation8 + $0x8c] sm:$0xff]
    %v461 = vld [vmem:[#allocation8 + $0x94] sm:$0xff]
    %v462 = vld [vmem:[#allocation8 + $0x9c] sm:$0xff]
    %v463 = vld [vmem:[#allocation8 + $0xa4] sm:$0xf]
    %v464 = vld [vmem:[#allocation8 + $0xa8] sm:$0xff]
    %v465 = vld [vmem:[#allocation8 + $0xb0] sm:$0xff]
    %v466 = vld [vmem:[#allocation8 + $0xb8] sm:$0xff]
    %v467 = vld [vmem:[#allocation8 + $0xc0] sm:$0xf]
    %v468 = vld [vmem:[#allocation8 + $0xc4] sm:$0xff]
    %v469 = vld [vmem:[#allocation8 + $0xcc] sm:$0xff]
    %v470 = vld [vmem:[#allocation8 + $0xd4] sm:$0xff]
    %v471 = vld [vmem:[#allocation8 + $0xdc] sm:$0xf]
    %v472 = vld [vmem:[#allocation8 + $0xe0] sm:$0xff]
    %v473 = vld [vmem:[#allocation8 + $0xe8] sm:$0xff]
    %v474 = vld [vmem:[#allocation8 + $0xf0] sm:$0xff]
    %v475 = vld [vmem:[#allocation8 + $0xf8] sm:$0xf]
    %v476 = vld [vmem:[#allocation8 + $0xfc] sm:$0xff]
    %v477 = vld [vmem:[#allocation8 + $0x104] sm:$0xff]
    %v478 = vld [vmem:[#allocation8 + $0x10c] sm:$0xff]
    %v479 = vld [vmem:[#allocation8 + $0x114] sm:$0xf]
    %v480 = vld [vmem:[#allocation8 + $0x118] sm:$0xff]
    %v481 = vld [vmem:[#allocation8 + $0x120] sm:$0xff]
    %v482 = vld [vmem:[#allocation8 + $0x128] sm:$0xff]
    %v483 = vld [vmem:[#allocation8 + $0x130] sm:$0xf]
    %v484 = vld [vmem:[#allocation8 + $0x134] sm:$0xff]
    %v485 = vld [vmem:[#allocation8 + $0x13c] sm:$0xff]
    %v486 = vld [vmem:[#allocation8 + $0x144] sm:$0xff]
    %v487 = vld [vmem:[#allocation8 + $0x14c] sm:$0xf]
    %v488 = vld [vmem:[#allocation8 + $0x150] sm:$0xff]
    %v489 = vld [vmem:[#allocation8 + $0x158] sm:$0xff]
    %v490 = vld [vmem:[#allocation8 + $0x160] sm:$0xff]
    %v491 = vld [vmem:[#allocation8 + $0x168] sm:$0xf]
    %v492 = vld [vmem:[#allocation8 + $0x16c] sm:$0xff]
    %v493 = vld [vmem:[#allocation8 + $0x174] sm:$0xff]
    %v494 = vld [vmem:[#allocation8 + $0x17c] sm:$0xff]
    %v495 = vld [vmem:[#allocation8 + $0x184] sm:$0xf]
    %v496 = vld [vmem:[#allocation8 + $0x188] sm:$0xff]
    %v497 = vld [vmem:[#allocation8 + $0x190] sm:$0xff]
    %v498 = vld [vmem:[#allocation8 + $0x198] sm:$0xff]
    %v499 = vld [vmem:[#allocation8 + $0x1a0] sm:$0xf]
    %v500 = vld [vmem:[#allocation8 + $0x1a4] sm:$0xff]
    %v501 = vld [vmem:[#allocation8 + $0x1ac] sm:$0xff]
    %v502 = vld [vmem:[#allocation8 + $0x1b4] sm:$0xff]
    %v503 = vld [vmem:[#allocation8 + $0x1bc] sm:$0xf]
    %v504 = vld [vmem:[#allocation8 + $0x1c0] sm:$0xff]
    %v505 = vld [vmem:[#allocation8 + $0x1c8] sm:$0xff]
    %v506 = vld [vmem:[#allocation8 + $0x1d0] sm:$0xff]
    %v507 = vld [vmem:[#allocation8 + $0x1d8] sm:$0xf]
    %v508 = vld [vmem:[#allocation8 + $0x1dc] sm:$0xff]
    %v509 = vld [vmem:[#allocation8 + $0x1e4] sm:$0xff]
    %v510 = vld [vmem:[#allocation8 + $0x1ec] sm:$0xff]
    %v511 = vld [vmem:[#allocation8 + $0x1f4] sm:$0xf]
    %v512 = vld [vmem:[#allocation8 + $0x1f8] sm:$0xff]
    %v513 = vld [vmem:[#allocation8 + $0x200] sm:$0xff]
    %v514 = vld [vmem:[#allocation8 + $0x208] sm:$0xff]
    %v515 = vld [vmem:[#allocation8 + $0x210] sm:$0xf]
    %v516 = vld [vmem:[#allocation8 + $0x214] sm:$0xff]
    %v517 = vld [vmem:[#allocation8 + $0x21c] sm:$0xff]
    %v518 = vld [vmem:[#allocation8 + $0x224] sm:$0xff]
    %v519 = vld [vmem:[#allocation8 + $0x22c] sm:$0xf]
    %v520 = vld [vmem:[#allocation8 + $0x230] sm:$0xff]
    %v521 = vld [vmem:[#allocation8 + $0x238] sm:$0xff]
    %v522 = vld [vmem:[#allocation8 + $0x240] sm:$0xff]
    %v523 = vld [vmem:[#allocation8 + $0x248] sm:$0xf]
    %v524 = vld [vmem:[#allocation8 + $0x24c] sm:$0xff]
    %v525 = vld [vmem:[#allocation8 + $0x254] sm:$0xff]
    %v526 = vld [vmem:[#allocation8 + $0x25c] sm:$0xff]
    %v527 = vld [vmem:[#allocation8 + $0x264] sm:$0xf]
    %v528 = vld [vmem:[#allocation8 + $0x268] sm:$0xff]
    %v529 = vld [vmem:[#allocation8 + $0x270] sm:$0xff]
    %v530 = vld [vmem:[#allocation8 + $0x278] sm:$0xff]
    %v531 = vld [vmem:[#allocation8 + $0x280] sm:$0xf]
    %v532 = vld [vmem:[#allocation8 + $0x284] sm:$0xff]
    %v533 = vld [vmem:[#allocation8 + $0x28c] sm:$0xff]
    %v534 = vld [vmem:[#allocation8 + $0x294] sm:$0xff]
    %v535 = vld [vmem:[#allocation8 + $0x29c] sm:$0xf]
    %v536 = vld [vmem:[#allocation8 + $0x2a0] sm:$0xff]
    %v537 = vld [vmem:[#allocation8 + $0x2a8] sm:$0xff]
    %v538 = vld [vmem:[#allocation8 + $0x2b0] sm:$0xff]
    %v539 = vld [vmem:[#allocation8 + $0x2b8] sm:$0xf]
    %v540 = vld [vmem:[#allocation8 + $0x2bc] sm:$0xff]
    %v541 = vld [vmem:[#allocation8 + $0x2c4] sm:$0xff]
    %v542 = vld [vmem:[#allocation8 + $0x2cc] sm:$0xff]
    %v543 = vld [vmem:[#allocation8 + $0x2d4] sm:$0xf]
    %v544 = vld [vmem:[#allocation8 + $0x2d8] sm:$0xff]
    %v545 = vld [vmem:[#allocation8 + $0x2e0] sm:$0xff]
    %v546 = vld [vmem:[#allocation8 + $0x2e8] sm:$0xff]
    %v547 = vld [vmem:[#allocation8 + $0x2f0] sm:$0xf]
    %v548 = vld [vmem:[#allocation8 + $0x2f4] sm:$0xff]
    %v549 = vld [vmem:[#allocation8 + $0x2fc] sm:$0xff]
    %v550 = vld [vmem:[#allocation8 + $0x304] sm:$0xff]
    %v551 = vld [vmem:[#allocation8 + $0x30c] sm:$0xf]
    %v552 = vld [vmem:[#allocation8 + $0x310] sm:$0xff]
    %v553 = vld [vmem:[#allocation8 + $0x318] sm:$0xff]
    %v554 = vld [vmem:[#allocation8 + $0x320] sm:$0xff]
    %v555 = vld [vmem:[#allocation8 + $0x328] sm:$0xf]
    %v556 = vld [vmem:[#allocation8 + $0x32c] sm:$0xff]
    %v557 = vld [vmem:[#allocation8 + $0x334] sm:$0xff]
    %v558 = vld [vmem:[#allocation8 + $0x33c] sm:$0xff]
    %v559 = vld [vmem:[#allocation8 + $0x344] sm:$0xf]
    %v560 = vld [vmem:[#allocation8 + $0x348] sm:$0xff]
    %v561 = vld [vmem:[#allocation8 + $0x350] sm:$0xff]
    %v562 = vld [vmem:[#allocation8 + $0x358] sm:$0xff]
    %v563 = vld [vmem:[#allocation8 + $0x360] sm:$0xf]
    %v564 = vld [vmem:[#allocation8 + $0x364] sm:$0xff]
    %v565 = vld [vmem:[#allocation8 + $0x36c] sm:$0xff]
    %v566 = vld [vmem:[#allocation8 + $0x374] sm:$0xff]
    %v567 = vld [vmem:[#allocation8 + $0x37c] sm:$0xf]
    %v568 = vld [vmem:[%s6] sm:$0xff]
    %v570 = vlaneseq
    %v571 = vshrl.u32 %v570, 7
    %v572 = vsub.s32 0, %v571
    %v573 = vrot.slane %v568, %v572
    %v574 = vlaneseq
    %v575 = vshrl.u32 %v574, 7
    %v576 = vsub.s32 1, %v575
    %v577 = vrot.slane %v568, %v576
    %v578 = vlaneseq
    %v579 = vshrl.u32 %v578, 7
    %v580 = vsub.s32 2, %v579
    %v581 = vrot.slane %v568, %v580
    %v582 = vlaneseq
    %v583 = vshrl.u32 %v582, 7
    %v584 = vsub.s32 3, %v583
    %v585 = vrot.slane %v568, %v584
    %v586 = vlaneseq
    %v587 = vshrl.u32 %v586, 7
    %v588 = vsub.s32 4, %v587
    %v589 = vrot.slane %v568, %v588
    %v590 = vlaneseq
    %v591 = vshrl.u32 %v590, 7
    %v592 = vsub.s32 5, %v591
    %v593 = vrot.slane %v568, %v592
    %v594 = vlaneseq
    %v595 = vshrl.u32 %v594, 7
    %v596 = vsub.s32 6, %v595
    %v597 = vrot.slane %v568, %v596
    %v733 = vunpack.c.l.b16 %v440
    %v734 = vunpack.c.h.b16 %v440
    %v735 = vunpack.c.l.b16 %v441
    %v736 = vunpack.c.h.b16 %v441
    %v737 = vunpack.c.l.b16 %v442
    %v738 = vunpack.c.h.b16 %v442
    %v739 = vunpack.c.l.b16 %v443
    %v740 = vunpack.c.l.b16 %v444
    %v741 = vunpack.c.h.b16 %v444
    %v742 = vunpack.c.l.b16 %v445
    %v743 = vunpack.c.h.b16 %v445
    %v744 = vunpack.c.l.b16 %v446
    %v745 = vunpack.c.h.b16 %v446
    %v746 = vunpack.c.l.b16 %v447
    %v747 = vunpack.c.l.b16 %v448
    %v748 = vunpack.c.h.b16 %v448
    %v749 = vunpack.c.l.b16 %v449
    %v750 = vunpack.c.h.b16 %v449
    %v751 = vunpack.c.l.b16 %v450
    %v752 = vunpack.c.h.b16 %v450
    %v753 = vunpack.c.l.b16 %v451
    %v754 = vunpack.c.l.b16 %v452
    %v755 = vunpack.c.h.b16 %v452
    %v756 = vunpack.c.l.b16 %v453
    %v757 = vunpack.c.h.b16 %v453
    %v758 = vunpack.c.l.b16 %v454
    %v759 = vunpack.c.h.b16 %v454
    %v760 = vunpack.c.l.b16 %v455
    %v761 = vunpack.c.l.b16 %v456
    %v762 = vunpack.c.h.b16 %v456
    %v763 = vunpack.c.l.b16 %v457
    %v764 = vunpack.c.h.b16 %v457
    %v765 = vunpack.c.l.b16 %v458
    %v766 = vunpack.c.h.b16 %v458
    %v767 = vunpack.c.l.b16 %v459
    %v768 = vunpack.c.l.b16 %v460
    %v769 = vunpack.c.h.b16 %v460
    %v770 = vunpack.c.l.b16 %v461
    %v771 = vunpack.c.h.b16 %v461
    %v772 = vunpack.c.l.b16 %v462
    %v773 = vunpack.c.h.b16 %v462
    %v774 = vunpack.c.l.b16 %v463
    %v775 = vunpack.c.l.b16 %v464
    %v776 = vunpack.c.h.b16 %v464
    %v777 = vunpack.c.l.b16 %v465
    %v778 = vunpack.c.h.b16 %v465
    %v779 = vunpack.c.l.b16 %v466
    %v780 = vunpack.c.h.b16 %v466
    %v781 = vunpack.c.l.b16 %v467
    %v782 = vunpack.c.l.b16 %v468
    %v783 = vunpack.c.h.b16 %v468
    %v784 = vunpack.c.l.b16 %v469
    %v785 = vunpack.c.h.b16 %v469
    %v786 = vunpack.c.l.b16 %v470
    %v787 = vunpack.c.h.b16 %v470
    %v788 = vunpack.c.l.b16 %v471
    %v789 = vunpack.c.l.b16 %v472
    %v790 = vunpack.c.h.b16 %v472
    %v791 = vunpack.c.l.b16 %v473
    %v792 = vunpack.c.h.b16 %v473
    %v793 = vunpack.c.l.b16 %v474
    %v794 = vunpack.c.h.b16 %v474
    %v795 = vunpack.c.l.b16 %v475
    %v796 = vunpack.c.l.b16 %v476
    %v797 = vunpack.c.h.b16 %v476
    %v798 = vunpack.c.l.b16 %v477
    %v799 = vunpack.c.h.b16 %v477
    %v800 = vunpack.c.l.b16 %v478
    %v801 = vunpack.c.h.b16 %v478
    %v802 = vunpack.c.l.b16 %v479
    %v803 = vunpack.c.l.b16 %v480
    %v804 = vunpack.c.h.b16 %v480
    %v805 = vunpack.c.l.b16 %v481
    %v806 = vunpack.c.h.b16 %v481
    %v807 = vunpack.c.l.b16 %v482
    %v808 = vunpack.c.h.b16 %v482
    %v809 = vunpack.c.l.b16 %v483
    %v810 = vunpack.c.l.b16 %v484
    %v811 = vunpack.c.h.b16 %v484
    %v812 = vunpack.c.l.b16 %v485
    %v813 = vunpack.c.h.b16 %v485
    %v814 = vunpack.c.l.b16 %v486
    %v815 = vunpack.c.h.b16 %v486
    %v816 = vunpack.c.l.b16 %v487
    %v817 = vunpack.c.l.b16 %v488
    %v818 = vunpack.c.h.b16 %v488
    %v819 = vunpack.c.l.b16 %v489
    %v820 = vunpack.c.h.b16 %v489
    %v821 = vunpack.c.l.b16 %v490
    %v822 = vunpack.c.h.b16 %v490
    %v823 = vunpack.c.l.b16 %v491
    %v824 = vunpack.c.l.b16 %v492
    %v825 = vunpack.c.h.b16 %v492
    %v826 = vunpack.c.l.b16 %v493
    %v827 = vunpack.c.h.b16 %v493
    %v828 = vunpack.c.l.b16 %v494
    %v829 = vunpack.c.h.b16 %v494
    %v830 = vunpack.c.l.b16 %v495
    %v831 = vunpack.c.l.b16 %v496
    %v832 = vunpack.c.h.b16 %v496
    %v833 = vunpack.c.l.b16 %v497
    %v834 = vunpack.c.h.b16 %v497
    %v835 = vunpack.c.l.b16 %v498
    %v836 = vunpack.c.h.b16 %v498
    %v837 = vunpack.c.l.b16 %v499
    %v838 = vunpack.c.l.b16 %v500
    %v839 = vunpack.c.h.b16 %v500
    %v840 = vunpack.c.l.b16 %v501
    %v841 = vunpack.c.h.b16 %v501
    %v842 = vunpack.c.l.b16 %v502
    %v843 = vunpack.c.h.b16 %v502
    %v844 = vunpack.c.l.b16 %v503
    %v845 = vunpack.c.l.b16 %v504
    %v846 = vunpack.c.h.b16 %v504
    %v847 = vunpack.c.l.b16 %v505
    %v848 = vunpack.c.h.b16 %v505
    %v849 = vunpack.c.l.b16 %v506
    %v850 = vunpack.c.h.b16 %v506
    %v851 = vunpack.c.l.b16 %v507
    %v852 = vunpack.c.l.b16 %v508
    %v853 = vunpack.c.h.b16 %v508
    %v854 = vunpack.c.l.b16 %v509
    %v855 = vunpack.c.h.b16 %v509
    %v856 = vunpack.c.l.b16 %v510
    %v857 = vunpack.c.h.b16 %v510
    %v858 = vunpack.c.l.b16 %v511
    %v859 = vunpack.c.l.b16 %v512
    %v860 = vunpack.c.h.b16 %v512
    %v861 = vunpack.c.l.b16 %v513
    %v862 = vunpack.c.h.b16 %v513
    %v863 = vunpack.c.l.b16 %v514
    %v864 = vunpack.c.h.b16 %v514
    %v865 = vunpack.c.l.b16 %v515
    %v866 = vunpack.c.l.b16 %v516
    %v867 = vunpack.c.h.b16 %v516
    %v868 = vunpack.c.l.b16 %v517
    %v869 = vunpack.c.h.b16 %v517
    %v870 = vunpack.c.l.b16 %v518
    %v871 = vunpack.c.h.b16 %v518
    %v872 = vunpack.c.l.b16 %v519
    %v873 = vunpack.c.l.b16 %v520
    %v874 = vunpack.c.h.b16 %v520
    %v875 = vunpack.c.l.b16 %v521
    %v876 = vunpack.c.h.b16 %v521
    %v877 = vunpack.c.l.b16 %v522
    %v878 = vunpack.c.h.b16 %v522
    %v879 = vunpack.c.l.b16 %v523
    %v880 = vunpack.c.l.b16 %v524
    %v881 = vunpack.c.h.b16 %v524
    %v882 = vunpack.c.l.b16 %v525
    %v883 = vunpack.c.h.b16 %v525
    %v884 = vunpack.c.l.b16 %v526
    %v885 = vunpack.c.h.b16 %v526
    %v886 = vunpack.c.l.b16 %v527
    %v887 = vunpack.c.l.b16 %v528
    %v888 = vunpack.c.h.b16 %v528
    %v889 = vunpack.c.l.b16 %v529
    %v890 = vunpack.c.h.b16 %v529
    %v891 = vunpack.c.l.b16 %v530
    %v892 = vunpack.c.h.b16 %v530
    %v893 = vunpack.c.l.b16 %v531
    %v894 = vunpack.c.l.b16 %v532
    %v895 = vunpack.c.h.b16 %v532
    %v896 = vunpack.c.l.b16 %v533
    %v897 = vunpack.c.h.b16 %v533
    %v898 = vunpack.c.l.b16 %v534
    %v899 = vunpack.c.h.b16 %v534
    %v900 = vunpack.c.l.b16 %v535
    %v901 = vunpack.c.l.b16 %v536
    %v902 = vunpack.c.h.b16 %v536
    %v903 = vunpack.c.l.b16 %v537
    %v904 = vunpack.c.h.b16 %v537
    %v905 = vunpack.c.l.b16 %v538
    %v906 = vunpack.c.h.b16 %v538
    %v907 = vunpack.c.l.b16 %v539
    %v908 = vunpack.c.l.b16 %v540
    %v909 = vunpack.c.h.b16 %v540
    %v910 = vunpack.c.l.b16 %v541
    %v911 = vunpack.c.h.b16 %v541
    %v912 = vunpack.c.l.b16 %v542
    %v913 = vunpack.c.h.b16 %v542
    %v914 = vunpack.c.l.b16 %v543
    %v915 = vunpack.c.l.b16 %v544
    %v916 = vunpack.c.h.b16 %v544
    %v917 = vunpack.c.l.b16 %v545
    %v918 = vunpack.c.h.b16 %v545
    %v919 = vunpack.c.l.b16 %v546
    %v920 = vunpack.c.h.b16 %v546
    %v921 = vunpack.c.l.b16 %v547
    %v922 = vunpack.c.l.b16 %v548
    %v923 = vunpack.c.h.b16 %v548
    %v924 = vunpack.c.l.b16 %v549
    %v925 = vunpack.c.h.b16 %v549
    %v926 = vunpack.c.l.b16 %v550
    %v927 = vunpack.c.h.b16 %v550
    %v928 = vunpack.c.l.b16 %v551
    %v929 = vunpack.c.l.b16 %v552
    %v930 = vunpack.c.h.b16 %v552
    %v931 = vunpack.c.l.b16 %v553
    %v932 = vunpack.c.h.b16 %v553
    %v933 = vunpack.c.l.b16 %v554
    %v934 = vunpack.c.h.b16 %v554
    %v935 = vunpack.c.l.b16 %v555
    %v936 = vunpack.c.l.b16 %v556
    %v937 = vunpack.c.h.b16 %v556
    %v938 = vunpack.c.l.b16 %v557
    %v939 = vunpack.c.h.b16 %v557
    %v940 = vunpack.c.l.b16 %v558
    %v941 = vunpack.c.h.b16 %v558
    %v942 = vunpack.c.l.b16 %v559
    %v943 = vunpack.c.l.b16 %v560
    %v944 = vunpack.c.h.b16 %v560
    %v945 = vunpack.c.l.b16 %v561
    %v946 = vunpack.c.h.b16 %v561
    %v947 = vunpack.c.l.b16 %v562
    %v948 = vunpack.c.h.b16 %v562
    %v949 = vunpack.c.l.b16 %v563
    %v950 = vunpack.c.l.b16 %v564
    %v951 = vunpack.c.h.b16 %v564
    %v952 = vunpack.c.l.b16 %v565
    %v953 = vunpack.c.h.b16 %v565
    %v954 = vunpack.c.l.b16 %v566
    %v955 = vunpack.c.h.b16 %v566
    %v956 = vunpack.c.l.b16 %v567
    %v957 = vpack.c.b16 %v740, %v733
    %v958 = vpack.c.b16 %v741, %v734
    %v959 = vpack.c.b16 %v742, %v735
    %v960 = vpack.c.b16 %v743, %v736
    %v961 = vpack.c.b16 %v744, %v737
    %v962 = vpack.c.b16 %v745, %v738
    %v963 = vpack.c.b16 %v746, %v739
    %v964 = vpack.c.b16 %v754, %v747
    %v965 = vpack.c.b16 %v755, %v748
    %v966 = vpack.c.b16 %v756, %v749
    %v967 = vpack.c.b16 %v757, %v750
    %v968 = vpack.c.b16 %v758, %v751
    %v969 = vpack.c.b16 %v759, %v752
    %v970 = vpack.c.b16 %v760, %v753
    %v971 = vpack.c.b16 %v768, %v761
    %v972 = vpack.c.b16 %v769, %v762
    %v973 = vpack.c.b16 %v770, %v763
    %v974 = vpack.c.b16 %v771, %v764
    %v975 = vpack.c.b16 %v772, %v765
    %v976 = vpack.c.b16 %v773, %v766
    %v977 = vpack.c.b16 %v774, %v767
    %v978 = vpack.c.b16 %v782, %v775
    %v979 = vpack.c.b16 %v783, %v776
    %v980 = vpack.c.b16 %v784, %v777
    %v981 = vpack.c.b16 %v785, %v778
    %v982 = vpack.c.b16 %v786, %v779
    %v983 = vpack.c.b16 %v787, %v780
    %v984 = vpack.c.b16 %v788, %v781
    %v985 = vpack.c.b16 %v796, %v789
    %v986 = vpack.c.b16 %v797, %v790
    %v987 = vpack.c.b16 %v798, %v791
    %v988 = vpack.c.b16 %v799, %v792
    %v989 = vpack.c.b16 %v800, %v793
    %v990 = vpack.c.b16 %v801, %v794
    %v991 = vpack.c.b16 %v802, %v795
    %v992 = vpack.c.b16 %v810, %v803
    %v993 = vpack.c.b16 %v811, %v804
    %v994 = vpack.c.b16 %v812, %v805
    %v995 = vpack.c.b16 %v813, %v806
    %v996 = vpack.c.b16 %v814, %v807
    %v997 = vpack.c.b16 %v815, %v808
    %v998 = vpack.c.b16 %v816, %v809
    %v999 = vpack.c.b16 %v824, %v817
    %v1000 = vpack.c.b16 %v825, %v818
    %v1001 = vpack.c.b16 %v826, %v819
    %v1002 = vpack.c.b16 %v827, %v820
    %v1003 = vpack.c.b16 %v828, %v821
    %v1004 = vpack.c.b16 %v829, %v822
    %v1005 = vpack.c.b16 %v830, %v823
    %v1006 = vpack.c.b16 %v838, %v831
    %v1007 = vpack.c.b16 %v839, %v832
    %v1008 = vpack.c.b16 %v840, %v833
    %v1009 = vpack.c.b16 %v841, %v834
    %v1010 = vpack.c.b16 %v842, %v835
    %v1011 = vpack.c.b16 %v843, %v836
    %v1012 = vpack.c.b16 %v844, %v837
    %v1013 = vpack.c.b16 %v852, %v845
    %v1014 = vpack.c.b16 %v853, %v846
    %v1015 = vpack.c.b16 %v854, %v847
    %v1016 = vpack.c.b16 %v855, %v848
    %v1017 = vpack.c.b16 %v856, %v849
    %v1018 = vpack.c.b16 %v857, %v850
    %v1019 = vpack.c.b16 %v858, %v851
    %v1020 = vpack.c.b16 %v866, %v859
    %v1021 = vpack.c.b16 %v867, %v860
    %v1022 = vpack.c.b16 %v868, %v861
    %v1023 = vpack.c.b16 %v869, %v862
    %v1024 = vpack.c.b16 %v870, %v863
    %v1025 = vpack.c.b16 %v871, %v864
    %v1026 = vpack.c.b16 %v872, %v865
    %v1027 = vpack.c.b16 %v880, %v873
    %v1028 = vpack.c.b16 %v881, %v874
    %v1029 = vpack.c.b16 %v882, %v875
    %v1030 = vpack.c.b16 %v883, %v876
    %v1031 = vpack.c.b16 %v884, %v877
    %v1032 = vpack.c.b16 %v885, %v878
    %v1033 = vpack.c.b16 %v886, %v879
    %v1034 = vpack.c.b16 %v894, %v887
    %v1035 = vpack.c.b16 %v895, %v888
    %v1036 = vpack.c.b16 %v896, %v889
    %v1037 = vpack.c.b16 %v897, %v890
    %v1038 = vpack.c.b16 %v898, %v891
    %v1039 = vpack.c.b16 %v899, %v892
    %v1040 = vpack.c.b16 %v900, %v893
    %v1041 = vpack.c.b16 %v908, %v901
    %v1042 = vpack.c.b16 %v909, %v902
    %v1043 = vpack.c.b16 %v910, %v903
    %v1044 = vpack.c.b16 %v911, %v904
    %v1045 = vpack.c.b16 %v912, %v905
    %v1046 = vpack.c.b16 %v913, %v906
    %v1047 = vpack.c.b16 %v914, %v907
    %v1048 = vpack.c.b16 %v922, %v915
    %v1049 = vpack.c.b16 %v923, %v916
    %v1050 = vpack.c.b16 %v924, %v917
    %v1051 = vpack.c.b16 %v925, %v918
    %v1052 = vpack.c.b16 %v926, %v919
    %v1053 = vpack.c.b16 %v927, %v920
    %v1054 = vpack.c.b16 %v928, %v921
    %v1055 = vpack.c.b16 %v936, %v929
    %v1056 = vpack.c.b16 %v937, %v930
    %v1057 = vpack.c.b16 %v938, %v931
    %v1058 = vpack.c.b16 %v939, %v932
    %v1059 = vpack.c.b16 %v940, %v933
    %v1060 = vpack.c.b16 %v941, %v934
    %v1061 = vpack.c.b16 %v942, %v935
    %v1062 = vpack.c.b16 %v950, %v943
    %v1063 = vpack.c.b16 %v951, %v944
    %v1064 = vpack.c.b16 %v952, %v945
    %v1065 = vpack.c.b16 %v953, %v946
    %v1066 = vpack.c.b16 %v954, %v947
    %v1067 = vpack.c.b16 %v955, %v948
    %v1068 = vpack.c.b16 %v956, %v949
    %1181 = vmatprep.subr.bf16.mxu0 %v958
    %1182 = vmatpush1.bf16.msra.mxu0 %v957
    %1183 = vmatprep.subr.bf16.mxu0 %v965
    %1184 = vmatpush1.bf16.msra.mxu0 %v964
    %1185 = vmatprep.subr.bf16.mxu0 %v972
    %1186 = vmatpush1.bf16.msra.mxu0 %v971
    %1187 = vmatprep.subr.bf16.mxu0 %v979
    %1188 = vmatpush1.bf16.msra.mxu0 %v978
    %1189 = vmatprep.subr.bf16.mxu0 %v986
    %1190 = vmatpush1.bf16.msra.mxu0 %v985
    %1191 = vmatprep.subr.bf16.mxu0 %v993
    %1192 = vmatpush1.bf16.msra.mxu0 %v992
    %1193 = vmatprep.subr.bf16.mxu0 %v1000
    %1194 = vmatpush1.bf16.msra.mxu0 %v999
    %1195 = vmatprep.subr.bf16.mxu0 %v1007
    %1196 = vmatpush1.bf16.msra.mxu0 %v1006
    %1197 = vmatprep.subr.bf16.mxu0 %v1014
    %1198 = vmatpush1.bf16.msra.mxu0 %v1013
    %1199 = vmatprep.subr.bf16.mxu0 %v1021
    %1200 = vmatpush1.bf16.msra.mxu0 %v1020
    %1201 = vmatprep.subr.bf16.mxu0 %v1028
    %1202 = vmatpush1.bf16.msra.mxu0 %v1027
    %1203 = vmatprep.subr.bf16.mxu0 %v1035
    %1204 = vmatpush1.bf16.msra.mxu0 %v1034
    %1205 = vmatprep.subr.bf16.mxu0 %v1042
    %1206 = vmatpush1.bf16.msra.mxu0 %v1041
    %1207 = vmatprep.subr.bf16.mxu0 %v1049
    %1208 = vmatpush1.bf16.msra.mxu0 %v1048
    %1209 = vmatprep.subr.bf16.mxu0 %v1056
    %1210 = vmatpush1.bf16.msra.mxu0 %v1055
    %1211 = vmatprep.subr.bf16.mxu0 %v1063
    %1212 = vmatpush1.bf16.msra.mxu0 %v1062
    %1213 = vmatprep.mubr.bf16.mxu0 %v439
    %1214 = vmatmul.mubr.bf16.gmra.mrb[0].mxu0 %v438
    %v1215 = vpop.f32.mrb[0].mxu0
    %v1216 = vadd.f32 %v573, %v1215
    %v1217 = vpop.f32.mrb[0].mxu0
    %v1218 = vadd.f32 %v577, %v1217
    %v1219 = vpop.f32.mrb[0].mxu0
    %v1220 = vpop.f32.mrb[0].mxu0
    %1221 = vdwg.mxu0
    %1222 = vmatprep.subr.bf16.mxu0 %v960
    %1223 = vmatpush1.bf16.msra.mxu0 %v959
    %1224 = vmatprep.subr.bf16.mxu0 %v967
    %1225 = vmatpush1.bf16.msra.mxu0 %v966
    %1226 = vmatprep.subr.bf16.mxu0 %v974
    %1227 = vmatpush1.bf16.msra.mxu0 %v973
    %1228 = vmatprep.subr.bf16.mxu0 %v981
    %1229 = vmatpush1.bf16.msra.mxu0 %v980
    %1230 = vmatprep.subr.bf16.mxu0 %v988
    %1231 = vmatpush1.bf16.msra.mxu0 %v987
    %1232 = vmatprep.subr.bf16.mxu0 %v995
    %1233 = vmatpush1.bf16.msra.mxu0 %v994
    %1234 = vmatprep.subr.bf16.mxu0 %v1002
    %1235 = vmatpush1.bf16.msra.mxu0 %v1001
    %1236 = vmatprep.subr.bf16.mxu0 %v1009
    %1237 = vmatpush1.bf16.msra.mxu0 %v1008
    %1238 = vmatprep.subr.bf16.mxu0 %v1016
    %1239 = vmatpush1.bf16.msra.mxu0 %v1015
    %1240 = vmatprep.subr.bf16.mxu0 %v1023
    %1241 = vmatpush1.bf16.msra.mxu0 %v1022
    %1242 = vmatprep.subr.bf16.mxu0 %v1030
    %1243 = vmatpush1.bf16.msra.mxu0 %v1029
    %1244 = vmatprep.subr.bf16.mxu0 %v1037
    %1245 = vmatpush1.bf16.msra.mxu0 %v1036
    %1246 = vmatprep.subr.bf16.mxu0 %v1044
    %1247 = vmatpush1.bf16.msra.mxu0 %v1043
    %1248 = vmatprep.subr.bf16.mxu0 %v1051
    %1249 = vmatpush1.bf16.msra.mxu0 %v1050
    %1250 = vmatprep.subr.bf16.mxu0 %v1058
    %1251 = vmatpush1.bf16.msra.mxu0 %v1057
    %1252 = vmatprep.subr.bf16.mxu0 %v1065
    %1253 = vmatpush1.bf16.msra.mxu0 %v1064
    %1254 = vmatprep.mubr.bf16.mxu0 %v439
    %1255 = vmatmul.mubr.bf16.gmra.mrb[0].mxu0 %v438
    %v1256 = vpop.f32.mrb[0].mxu0
    %v1257 = vadd.f32 %v581, %v1256
    %v1258 = vpop.f32.mrb[0].mxu0
    %v1259 = vadd.f32 %v585, %v1258
    %v1260 = vpop.f32.mrb[0].mxu0
    %v1261 = vpop.f32.mrb[0].mxu0
    %1262 = vdwg.mxu0
    %1263 = vmatprep.subr.bf16.mxu0 %v962
    %1264 = vmatpush1.bf16.msra.mxu0 %v961
    %1265 = vmatprep.subr.bf16.mxu0 %v969
    %1266 = vmatpush1.bf16.msra.mxu0 %v968
    %1267 = vmatprep.subr.bf16.mxu0 %v976
    %1268 = vmatpush1.bf16.msra.mxu0 %v975
    %1269 = vmatprep.subr.bf16.mxu0 %v983
    %1270 = vmatpush1.bf16.msra.mxu0 %v982
    %1271 = vmatprep.subr.bf16.mxu0 %v990
    %1272 = vmatpush1.bf16.msra.mxu0 %v989
    %1273 = vmatprep.subr.bf16.mxu0 %v997
    %1274 = vmatpush1.bf16.msra.mxu0 %v996
    %1275 = vmatprep.subr.bf16.mxu0 %v1004
    %1276 = vmatpush1.bf16.msra.mxu0 %v1003
    %1277 = vmatprep.subr.bf16.mxu0 %v1011
    %1278 = vmatpush1.bf16.msra.mxu0 %v1010
    %1279 = vmatprep.subr.bf16.mxu0 %v1018
    %1280 = vmatpush1.bf16.msra.mxu0 %v1017
    %1281 = vmatprep.subr.bf16.mxu0 %v1025
    %1282 = vmatpush1.bf16.msra.mxu0 %v1024
    %1283 = vmatprep.subr.bf16.mxu0 %v1032
    %1284 = vmatpush1.bf16.msra.mxu0 %v1031
    %1285 = vmatprep.subr.bf16.mxu0 %v1039
    %1286 = vmatpush1.bf16.msra.mxu0 %v1038
    %1287 = vmatprep.subr.bf16.mxu0 %v1046
    %1288 = vmatpush1.bf16.msra.mxu0 %v1045
    %1289 = vmatprep.subr.bf16.mxu0 %v1053
    %1290 = vmatpush1.bf16.msra.mxu0 %v1052
    %1291 = vmatprep.subr.bf16.mxu0 %v1060
    %1292 = vmatpush1.bf16.msra.mxu0 %v1059
    %1293 = vmatprep.subr.bf16.mxu0 %v1067
    %1294 = vmatpush1.bf16.msra.mxu0 %v1066
    %1295 = vmatprep.mubr.bf16.mxu0 %v439
    %1296 = vmatmul.mubr.bf16.gmra.mrb[0].mxu0 %v438
    %v1297 = vpop.f32.mrb[0].mxu0
    %v1298 = vadd.f32 %v589, %v1297
    %v1299 = vpop.f32.mrb[0].mxu0
    %v1300 = vadd.f32 %v593, %v1299
    %v1301 = vpop.f32.mrb[0].mxu0
    %v1302 = vpop.f32.mrb[0].mxu0
    %1303 = vdwg.mxu0
    %1304 = vmatprep.subr.bf16.mxu0 0
    %1305 = vmatpush1.bf16.msra.mxu0 %v963
    %1306 = vmatprep.subr.bf16.mxu0 0
    %1307 = vmatpush1.bf16.msra.mxu0 %v970
    %1308 = vmatprep.subr.bf16.mxu0 0
    %1309 = vmatpush1.bf16.msra.mxu0 %v977
    %1310 = vmatprep.subr.bf16.mxu0 0
    %1311 = vmatpush1.bf16.msra.mxu0 %v984
    %1312 = vmatprep.subr.bf16.mxu0 0
    %1313 = vmatpush1.bf16.msra.mxu0 %v991
    %1314 = vmatprep.subr.bf16.mxu0 0
    %1315 = vmatpush1.bf16.msra.mxu0 %v998
    %1316 = vmatprep.subr.bf16.mxu0 0
    %1317 = vmatpush1.bf16.msra.mxu0 %v1005
    %1318 = vmatprep.subr.bf16.mxu0 0
    %1319 = vmatpush1.bf16.msra.mxu0 %v1012
    %1320 = vmatprep.subr.bf16.mxu0 0
    %1321 = vmatpush1.bf16.msra.mxu0 %v1019
    %1322 = vmatprep.subr.bf16.mxu0 0
    %1323 = vmatpush1.bf16.msra.mxu0 %v1026
    %1324 = vmatprep.subr.bf16.mxu0 0
    %1325 = vmatpush1.bf16.msra.mxu0 %v1033
    %1326 = vmatprep.subr.bf16.mxu0 0
    %1327 = vmatpush1.bf16.msra.mxu0 %v1040
    %1328 = vmatprep.subr.bf16.mxu0 0
    %1329 = vmatpush1.bf16.msra.mxu0 %v1047
    %1330 = vmatprep.subr.bf16.mxu0 0
    %1331 = vmatpush1.bf16.msra.mxu0 %v1054
    %1332 = vmatprep.subr.bf16.mxu0 0
    %1333 = vmatpush1.bf16.msra.mxu0 %v1061
    %1334 = vmatprep.subr.bf16.mxu0 0
    %1335 = vmatpush1.bf16.msra.mxu0 %v1068
    %1336 = vmatprep.mubr.bf16.mxu0 %v439
    %1337 = vmatmul.mubr.bf16.gmra.mrb[0].mxu0 %v438
    %v1338 = vpop.f32.mrb[0].mxu0
    %v1339 = vadd.f32 %v597, %v1338
    %v1340 = vpop.f32.mrb[0].mxu0
    %v1341 = vpop.f32.mrb[0].mxu0
    %v1342 = vpop.f32.mrb[0].mxu0
    %1343 = vdwg.mxu0
    %v1344 = vtanh.pop %v1216
    %v1345 = vtanh.pop %v1218
    %v1346 = vtanh.pop %v1257
    %v1347 = vtanh.pop %v1259
    %v1348 = vtanh.pop %v1298
    %v1349 = vtanh.pop %v1300
    %v1350 = vtanh.pop %v1339
    %1351 = vst [vmem:[#allocation10] sm:$0xff] %v1344
    %1352 = vst [vmem:[#allocation10 + $0x8] sm:$0xff] %v1345
    %1353 = vst [vmem:[#allocation10 + $0x10] sm:$0xff] %v1346
    %1354 = vst [vmem:[#allocation10 + $0x18] sm:$0xff] %v1347
    %1355 = vst [vmem:[#allocation10 + $0x20] sm:$0xff] %v1348
    %1356 = vst [vmem:[#allocation10 + $0x28] sm:$0xff] %v1349
    %1357 = vst [vmem:[#allocation10 + $0x30] sm:$0xff] %v1350
    // Predicated region
    $region46: #{tpu_custom_call.1} parent=1 // pred_check
      _
    $region47: #{tpu_custom_call.1} parent=1 // pred_check_branch
      %1359 = sbr.rel (0) target = $region49
    $region48: #{tpu_custom_call.1} parent=1 // pred_region
      %s1361 = ssub.s32 896, 896
      %1362 = vsyncadd [#allocation4], %s1361
      %s1364 = sshll.u32 [#allocation10], 4
      %s1365 = int_to_ptr.vmem [resolvable:$true] %s1364
      %1367 = dma.vmem_to_hbm [thread:$0]  %s1365, 896, %s7, [#allocation4]
    $region49: #{tpu_custom_call.1} parent=1 // pred_fallthru
      _
    // Predicated region
    $region50: #{tpu_custom_call.1} parent=1 // pred_check
      _
    $region51: #{tpu_custom_call.1} parent=1 // pred_check_branch
      %1369 = sbr.rel (0) target = $region53
    $region52: #{tpu_custom_call.1} parent=1 // pred_region
      %1370 = dma.done [#allocation4], 896
    $region53: #{tpu_custom_call.1} parent=1 // pred_fallthru
      _
    %1371 = vsyncpa [#allocation3], 1
    %1372 = vsyncpa [#allocation6], 1
    %1373 = vsyncpa [#allocation9], 1
    %1374 = vsyncpa [#allocation4], 1

</llo_original>
